<compile_context>
chip_gen: v5e
topology: v5e:2x2
jax: 0.10.0
libtpu: 0.0.40
codegen_flags: <defaults>
</compile_context>

<pallas_src>
import jax
import jax.numpy as jnp
from jax.experimental import pallas as pl
from jax.experimental.pallas import tpu as pltpu

_MAX_LANE_WIDTH = 4096                  # search cap for the lane-dense last dim
_TARGET_BLOCK_BYTES = 4 * 1024 * 1024   # ~4 MiB row tiles (fits v7x VMEM easily)
_MIN_GRID_BLOCKS = 4                    # let v7x's 2 TCs split the "parallel" axis
_SMALL_FALLBACK_ELEMS = 65536           # below this, plain fused XLA is faster


def _sigmoid_range_kernel(params_ref, x_ref, o_ref):
    low = params_ref[0]
    scale = params_ref[1]
    xf = x_ref[...].astype(jnp.float32)
    # sigmoid(x) = 1 / (1 + exp(-x)): exp goes to the EUP slot.  On v5e the
    # reciprocal could also be routed to the EUP with approx=True, but the
    # kernel is HBM-bound on every generation so we keep exact numerics.
    sig = pl.reciprocal(1.0 + jnp.exp(-xf), approx=False)
    o_ref[...] = (sig * scale + low).astype(o_ref.dtype)


def _pick_lane_width(total):
    """Largest multiple-of-128 divisor of `total` (capped), or 0 if none."""
    cand = min(_MAX_LANE_WIDTH, (total // 128) * 128)
    while cand >= 128:
        if total % cand == 0:
            return cand
        cand -= 128
    return 0


def sigmoid_range(x, low, high, *, small_fallback_elems=_SMALL_FALLBACK_ELEMS):
    """Pallas TPU implementation of torch.sigmoid(x) * (high - low) + low."""
    orig_shape = x.shape
    total = x.size
    if total == 0:
        return x

    low32 = jnp.asarray(low, jnp.float32)
    scale32 = jnp.asarray(high, jnp.float32) - low32

    # Small-input fast path: a single fused XLA elementwise op beats the kernel
    # launch, grid-step overhead and the flatten round-trip.
    if total < small_fallback_elems:
        return (jax.nn.sigmoid(x.astype(jnp.float32)) * scale32 + low32).astype(x.dtype)

    flat = x.reshape(-1)                 # contiguous reshape: free (bitcast)

    CW = _pick_lane_width(total)
    padded_tail = 0
    if CW == 0:
        # total is not a multiple of 128 (rare for NN activations): pad up to a
        # lane-dense row and slice afterwards.  The aligned path above handles
        # every multiple-of-128 size with exactly one read + one write.
        CW = 1024
        padded_tail = (-total) % CW
        flat = jnp.pad(flat, (0, padded_tail))

    R = (total + padded_tail) // CW
    x2 = flat.reshape(R, CW)

    itemsize = jnp.dtype(x.dtype).itemsize
    sub = max(8, 32 // itemsize)         # sublane packing: f32->8, bf16->16, int8->32
    if R <= sub:
        TR = R                           # full-extent block (always legal)
    else:
        tr_cap = max(sub, (_TARGET_BLOCK_BYTES // (CW * itemsize)) // sub * sub)
        # Guarantee several grid blocks so the "parallel" axis can be sharded
        # across both v7x TensorCores for mid-sized tensors.
        tr_split = max(sub, (pl.cdiv(R, _MIN_GRID_BLOCKS) // sub) * sub)
        TR = min(tr_cap, tr_split)
    grid = (pl.cdiv(R, TR),)

    # VMEM budget: double-buffered in + out tiles plus headroom; stays well
    # under v7x's 64 MiB physical VMEM per TensorCore.
    block_bytes = TR * CW * itemsize
    vmem_limit = min(4 * block_bytes + 12 * 1024 * 1024, 40 * 1024 * 1024)

    params = jnp.stack([low32, scale32])

    out2 = pl.pallas_call(
        _sigmoid_range_kernel,
        out_shape=jax.ShapeDtypeStruct((R, CW), x.dtype),
        grid=grid,
        in_specs=[
            pl.BlockSpec(memory_space=pltpu.MemorySpace.SMEM),   # [low, high-low]
            # On v6e (128 MiB VMEM) pipeline_mode=pl.Buffered(3) is a cheap
            # option if a trace ever shows exposed DMA; default 2 is kept so the
            # same tiling also fits v7x.
            pl.BlockSpec((TR, CW), lambda i: (i, 0)),
        ],
        out_specs=pl.BlockSpec((TR, CW), lambda i: (i, 0)),
        compiler_params=pltpu.CompilerParams(
            dimension_semantics=("parallel",),
            vmem_limit_bytes=vmem_limit,
        ),
    )(params, x2)

    out = out2.reshape(-1)
    if padded_tail:
        out = out[:total]
    return out.reshape(orig_shape)


if __name__ == "__main__":
    key = jax.random.PRNGKey(0)
    k0, k1, k2 = jax.random.split(key, 3)
    low, high = 0.5, 4.5

    def ref_fn(v):
        return jax.nn.sigmoid(v.astype(jnp.float32)) * (high - low) + low

    # Primary small NCHW input from the module spec.
    x = jax.random.normal(k0, (2, 4, 16, 16), dtype=jnp.float32)

    # 1) Default path: tiny tensor takes the fused-XLA fast path.
    out = jax.block_until_ready(sigmoid_range(x, low, high))
    assert out.shape == x.shape and out.dtype == x.dtype
    assert jnp.allclose(out, ref_fn(x), atol=1e-5, rtol=1e-5)

    # 2) Force the Pallas kernel path on the same small input (aligned, 1 block).
    out_k = jax.block_until_ready(sigmoid_range(x, low, high, small_fallback_elems=0))
    assert out_k.shape == x.shape and out_k.dtype == x.dtype
    assert jnp.allclose(out_k, ref_fn(x), atol=1e-5, rtol=1e-5)

    # 3) Kernel path with a multi-block "parallel" grid (no pad, no slice).
    x2 = jax.random.normal(k1, (2, 8, 64, 64), dtype=jnp.float32)
    out2 = jax.block_until_ready(sigmoid_range(x2, low, high))
    assert jnp.allclose(out2, ref_fn(x2), atol=1e-5, rtol=1e-5)

    # 4) Kernel path with an element count not divisible by 128 (pad fallback).
    x3 = jax.random.normal(k2, (3, 5, 7, 5), dtype=jnp.float32)
    out3 = jax.block_until_ready(sigmoid_range(x3, low, high, small_fallback_elems=0))
    assert out3.shape == x3.shape
    assert jnp.allclose(out3, ref_fn(x3), atol=1e-5, rtol=1e-5)

    print("KERNEL_OK")
</pallas_src>

<mosaic_0001>
module attributes {stable_mosaic.version = 11 : i64} {
  func.func @_sigmoid_range_kernel(%arg0: i32, %arg1: memref<2xf32, #tpu.memory_space<smem>>, %arg2: memref<1x2048xf32, #tpu.memory_space<vmem>>, %arg3: memref<1x2048xf32, #tpu.memory_space<vmem>>) attributes {dimension_semantics = [#tpu.dimension_semantics<parallel>], iteration_bounds = array<i64: 1>, scalar_prefetch = 0 : i64, scratch_operands = 0 : i64, tpu.core_type = #tpu.core_type<tc>, window_params = [{transform_indices = @transform_0, window_bounds = array<i64: 2>}, {transform_indices = @transform_1, window_bounds = array<i64: 1, 2048>}, {transform_indices = @transform_2, window_bounds = array<i64: 1, 2048>}]} {
    %c0 = arith.constant 0 : index
    %0 = memref.load %arg1[%c0] : memref<2xf32, #tpu.memory_space<smem>>
    %c1 = arith.constant 1 : index
    %1 = memref.load %arg1[%c1] : memref<2xf32, #tpu.memory_space<smem>>
    %c0_0 = arith.constant 0 : index
    %c0_1 = arith.constant 0 : index
    %2 = vector.load %arg2[%c0_0, %c0_1] : memref<1x2048xf32, #tpu.memory_space<vmem>>, vector<1x2048xf32>
    %cst = arith.constant 0.000000e+00 : f32
    %3 = vector.broadcast %cst : f32 to vector<1x2048xf32>
    %4 = arith.subf %3, %2 : vector<1x2048xf32>
    %5 = math.exp %4 : vector<1x2048xf32>
    %cst_2 = arith.constant 1.000000e+00 : f32
    %6 = vector.broadcast %cst_2 : f32 to vector<1x2048xf32>
    %7 = arith.addf %6, %5 : vector<1x2048xf32>
    %8 = tpu.reciprocal %7 : vector<1x2048xf32> -> vector<1x2048xf32>
    %9 = vector.broadcast %1 : f32 to vector<1x2048xf32>
    %10 = arith.mulf %8, %9 : vector<1x2048xf32>
    %11 = vector.broadcast %0 : f32 to vector<1x2048xf32>
    %12 = arith.addf %10, %11 : vector<1x2048xf32>
    %c0_3 = arith.constant 0 : index
    %c0_4 = arith.constant 0 : index
    %13 = vector.load %arg3[%c0_3, %c0_4] : memref<1x2048xf32, #tpu.memory_space<vmem>>, vector<1x2048xf32>
    tpu.vector_store %arg3[%c0_3, %c0_4], %12 {strides = array<i32>} : memref<1x2048xf32, #tpu.memory_space<vmem>>, vector<1x2048xf32>,
    return
  }
  func.func @transform_0(%arg0: i32) -> i32 {
    %c0_i32 = arith.constant 0 : i32
    %c0_i32_0 = arith.constant 0 : i32
    return %c0_i32 : i32
  }
  func.func @transform_1(%arg0: i32) -> (i32, i32) {
    %c0_i32 = arith.constant 0 : i32
    %c0_i32_0 = arith.constant 0 : i32
    return %arg0, %c0_i32 : i32, i32
  }
  func.func @transform_2(%arg0: i32) -> (i32, i32) {
    %c0_i32 = arith.constant 0 : i32
    %c0_i32_0 = arith.constant 0 : i32
    return %arg0, %c0_i32 : i32, i32
  }
}

</mosaic_0001>

<llo_original>
// kernel: tpu_custom_call.1
$region0: #{tpu_custom_call.1}
  #allocation0 [shape = 'u32[]', space=smem, size = 0x4, offset = 0x4, fixed_abs, tag = 'smem constant byte address 0x4 - core index']
  #allocation1 [shape = 'u32[72,128]{1,0:T(1,128)}', space=vmem, size = 0x9000, scoped, tag = 'internal scratch']
  %s0 = inlined_call_operand.hbm [shape: f32[2], index: 0, kind: input, shape index: {}]
  %s1 = inlined_call_operand.hbm [shape: f32[1,2048], index: 1, kind: input, shape index: {}]
  %s2 = inlined_call_operand.hbm [shape: f32[1,2048], index: 2, kind: output, shape index: {}]
  %s3 = sld [smem:[#allocation0]]
  $region26: #{tpu_custom_call.1} parent=0
    _
  %s5 = ssub.s32 1, %s3
  %s6 = scalar_select 0, %s5, %s3
  $region1: #{tpu_custom_call.1} parent=0
    #allocation2 [shape = 'u8[512]{0}', space=smem, size = 0x200, scoped, tag = 'input window, operand 0, single buffered']
    #allocation3 [shape = 's32[1]{0}', space=sflag, size = 0x4, scoped, tag = 'scoped memory for tpu_custom_call.1']
    #allocation4 [shape = 's32[1]{0}', space=sflag, size = 0x4, scoped, tag = 'scoped memory for tpu_custom_call.1']
    #allocation5 [shape = 's32[1]{0}', space=sflag, size = 0x4, scoped, tag = 'scoped memory for tpu_custom_call.1']
    #allocation6 [shape = 'u8[8192]{0}', space=vmem, size = 0x2000, scoped, tag = 'input window, operand 1, single buffered']
    #allocation7 [shape = 'u8[8192]{0}', space=vmem, size = 0x2000, scoped, tag = 'output window, operand 0, single buffered']
    %7 = vsyncpa [#allocation5], 0
    %8 = vsyncpa [#allocation3], 0
    %9 = vsyncpa [#allocation4], 0
    // Predicated region
    $region2: #{tpu_custom_call.1} parent=1 // pred_check
      _
    $region3: #{tpu_custom_call.1} parent=1 // pred_check_branch
      %11 = sbr.rel (0) target = $region5
    $region4: #{tpu_custom_call.1} parent=1 // pred_region
      %13 = vsyncadd [#allocation5], 0
      %s15 = sshll.u32 %s0, 4
      %s16 = int_to_ptr.hbm [resolvable:$true] %s15
      %18 = dma.hbm_to_smem %s16, 16, [#allocation2], [#allocation5]
    $region5: #{tpu_custom_call.1} parent=1 // pred_fallthru
      _
    // Predicated region
    $region6: #{tpu_custom_call.1} parent=1 // pred_check
      _
    $region7: #{tpu_custom_call.1} parent=1 // pred_check_branch
      %20 = sbr.rel (0) target = $region9
    $region8: #{tpu_custom_call.1} parent=1 // pred_region
      %22 = vsyncadd [#allocation3], 0
      %s24 = sshll.u32 %s1, 4
      %s25 = int_to_ptr.hbm [resolvable:$true] %s24
      %s26 = sshll.u32 [#allocation6], 4
      %s27 = int_to_ptr.vmem [resolvable:$true] %s26
      %29 = dma.hbm_to_vmem [thread:$0]  %s25, 256, %s27, [#allocation3]
    $region9: #{tpu_custom_call.1} parent=1 // pred_fallthru
      _
    // Predicated region
    $region10: #{tpu_custom_call.1} parent=1 // pred_check
      _
    $region11: #{tpu_custom_call.1} parent=1 // pred_check_branch
      %31 = sbr.rel (0) target = $region13
    $region12: #{tpu_custom_call.1} parent=1 // pred_region
      %33 = dma.done [#allocation5], 16
    $region13: #{tpu_custom_call.1} parent=1 // pred_fallthru
      _
    // Predicated region
    $region14: #{tpu_custom_call.1} parent=1 // pred_check
      _
    $region15: #{tpu_custom_call.1} parent=1 // pred_check_branch
      %35 = sbr.rel (0) target = $region17
    $region16: #{tpu_custom_call.1} parent=1 // pred_region
      %37 = dma.done [#allocation3], 256
    $region17: #{tpu_custom_call.1} parent=1 // pred_fallthru
      _
    %38 = sfence
    %s39 = sld [smem:[#allocation2]]
    %s40 = sld [smem:[#allocation2 + $0x1]]
    %v41 = vld [vmem:[#allocation6] sm:$0xff]
    %v42 = vld [vmem:[#allocation6 + $0x8] sm:$0xff]
    %v43 = vsub.f32 0.0, %v41
    %v44 = vsub.f32 0.0, %v42
    %v45 = vmul.f32 %v43, 1.442695
    %v46 = vpow.pop %v45
    %v47 = vmul.f32 %v44, 1.442695
    %v48 = vpow.pop %v47
    %v49 = vadd.f32 %v46, 1.0
    %v50 = vadd.f32 %v48, 1.0
    %v51 = vrcp.pop %v49
    %v52 = vmul.f32 %v49, %v51
    %v53 = vsub.f32 1.0, %v52
    %v54 = vmul.f32 %v51, %v53
    %v55 = vadd.f32 %v51, %v54
    %vm56 = vweird.f32 %v49
    %vm57 = vweird.f32 %v51
    %vm58 = vmor %vm56, %vm57
    %v59 = vsel %vm58, %v51, %v55
    %v60 = vand.u32 2147483647, %v49
    %vm61 = vcmp.eq.f32.partialorder %v60, 8.507059e+37
    %v62 = vand.u32 %v49, 2147483648
    %v63 = vor.u32 1.1754944e-38, %v62
    %v64 = vsel %vm61, %v63, %v59
    %v65 = vrcp.pop %v50
    %v66 = vmul.f32 %v50, %v65
    %v67 = vsub.f32 1.0, %v66
    %v68 = vmul.f32 %v65, %v67
    %v69 = vadd.f32 %v65, %v68
    %vm70 = vweird.f32 %v50
    %vm71 = vweird.f32 %v65
    %vm72 = vmor %vm70, %vm71
    %v73 = vsel %vm72, %v65, %v69
    %v74 = vand.u32 2147483647, %v50
    %vm75 = vcmp.eq.f32.partialorder %v74, 8.507059e+37
    %v76 = vand.u32 %v50, 2147483648
    %v77 = vor.u32 1.1754944e-38, %v76
    %v78 = vsel %vm75, %v77, %v73
    %v79 = vstv %s40
    %v80 = vmul.f32 %v64, %v79
    %v81 = vmul.f32 %v78, %v79
    %v82 = vstv %s39
    %v83 = vadd.f32 %v80, %v82
    %v84 = vadd.f32 %v81, %v82
    %85 = vst [vmem:[#allocation7] sm:$0xff] %v83
    %86 = vst [vmem:[#allocation7 + $0x8] sm:$0xff] %v84
    // Predicated region
    $region18: #{tpu_custom_call.1} parent=1 // pred_check
      _
    $region19: #{tpu_custom_call.1} parent=1 // pred_check_branch
      %88 = sbr.rel (0) target = $region21
    $region20: #{tpu_custom_call.1} parent=1 // pred_region
      %90 = vsyncadd [#allocation4], 0
      %s92 = sshll.u32 [#allocation7], 4
      %s93 = int_to_ptr.vmem [resolvable:$true] %s92
      %s94 = sshll.u32 %s2, 4
      %s95 = int_to_ptr.hbm [resolvable:$true] %s94
      %97 = dma.vmem_to_hbm [thread:$0]  %s93, 256, %s95, [#allocation4]
    $region21: #{tpu_custom_call.1} parent=1 // pred_fallthru
      _
    // Predicated region
    $region22: #{tpu_custom_call.1} parent=1 // pred_check
      _
    $region23: #{tpu_custom_call.1} parent=1 // pred_check_branch
      %99 = sbr.rel (0) target = $region25
    $region24: #{tpu_custom_call.1} parent=1 // pred_region
      %101 = dma.done [#allocation4], 256
    $region25: #{tpu_custom_call.1} parent=1 // pred_fallthru
      _
    %102 = vsyncpa [#allocation3], 1
    %103 = vsyncpa [#allocation4], 1
    %104 = vsyncpa [#allocation5], 1

</llo_original>
